<compile_context>
chip_gen: v7x
topology: tpu7x:2x2x1
jax: 0.10.0
libtpu: 0.0.40
codegen_flags: <defaults>
</compile_context>

<pallas_src>
import functools

import jax
import jax.numpy as jnp
from jax.experimental import pallas as pl
from jax.experimental.pallas import tpu as pltpu

_LANE = 128
_BT_GRAN = 16            # bf16 packs 2 rows/sublane -> 16-row tile granularity
_MAX_BATCH_TILE = 256    # fills the 256-wide MXU M dim on v6e/v7x


def _round_up(n, m):
    return ((n + m - 1) // m) * m


def _cdiv(a, b):
    return -(-a // b)


# --------------------------------------------------------------------------- #
# Kernel
# --------------------------------------------------------------------------- #
def _fnn_kernel(x_ref, *refs, compute_dtype):
    """refs = (w0, b0, w1, b1, ..., wL, bL, out_ref). Tanh between all but last.

    Weights (and x) arrive already in `compute_dtype` (bf16 by default); the
    running activation stays in f32 after each layer and is cast to
    `compute_dtype` only as a matmul operand. Accumulation is always f32.
    """
    out_ref = refs[-1]
    param_refs = refs[:-1]
    n_layers = len(param_refs) // 2

    h = x_ref[...]
    for i in range(n_layers):
        w = param_refs[2 * i][...]        # compute_dtype
        b = param_refs[2 * i + 1][...]    # f32
        h = jnp.dot(h.astype(compute_dtype), w,
                    preferred_element_type=jnp.float32) + b
        if i < n_layers - 1:
            h = jnp.tanh(h)               # f32 tanh (correct on v5e too)
    out_ref[...] = h.astype(out_ref.dtype)


# --------------------------------------------------------------------------- #
# One-time parameter preparation (hoisted off the per-call hot path)
# --------------------------------------------------------------------------- #
def prepare_fnn_params(params, *, use_bf16_matmul=True):
    """Pad + cast FNN params once.

    params: list of (W:(in,out), b:(out,) or (1,out)) per layer.
    Hidden/output feature dims are padded to multiples of 128 (lane-dense
    matmul operands and unmasked output stores); the input feature dim is
    left unpadded. Zero padding is mathematically inert (tanh(0)=0, zero
    weight rows/cols contribute nothing).
    """
    compute_dtype = jnp.bfloat16 if use_bf16_matmul else jnp.float32
    in_dim = params[0][0].shape[0]
    dims = [in_dim] + [w.shape[1] for w, _ in params]
    pdims = [dims[0]] + [_round_up(d, _LANE) for d in dims[1:]]

    flat_params = []
    for li, (w, b) in enumerate(params):
        pin, pout = pdims[li], pdims[li + 1]
        w = jnp.asarray(w, compute_dtype)
        w_p = jnp.pad(w, ((0, pin - w.shape[0]), (0, pout - w.shape[1])))
        b2 = jnp.reshape(jnp.asarray(b, jnp.float32), (1, -1))
        b_p = jnp.pad(b2, ((0, 0), (0, pout - b2.shape[1])))
        flat_params.extend([w_p, b_p])

    param_bytes = sum(int(p.size) * p.dtype.itemsize for p in flat_params)
    return dict(
        dims=tuple(dims),
        pdims=tuple(pdims),
        flat_params=flat_params,
        compute_dtype=compute_dtype,
        param_bytes=param_bytes,
    )


# --------------------------------------------------------------------------- #
# Tiling / VMEM heuristics
# --------------------------------------------------------------------------- #
def _choose_batch_tile(batch, max_pdim, batch_tile_cap):
    # Cap the tile when hidden width is large so the f32 activation working
    # set (h, bf16 copy, dot result) stays bounded (bites earlier on v7x).
    if max_pdim > 2048:
        cap = min(batch_tile_cap, 64)
    elif max_pdim > 1024:
        cap = min(batch_tile_cap, 128)
    else:
        cap = batch_tile_cap
    cap = max(cap, _BT_GRAN)

    rbatch = _round_up(batch, _BT_GRAN)
    n_tiles = _cdiv(rbatch, cap)
    # Guarantee >=2 grid steps when the batch permits so the "parallel" batch
    # axis can shard across both TensorCores on v7x (harmless on 1-TC chips).
    if n_tiles == 1 and batch >= 2 * _BT_GRAN:
        n_tiles = 2
    bt = _round_up(_cdiv(rbatch, n_tiles), _BT_GRAN)
    padded_batch = _round_up(batch, bt)
    return bt, padded_batch


def _vmem_limit_bytes(*, bt, pdims, x_itemsize, param_bytes,
                      single_buffer_weights):
    in_bytes = 2 * bt * pdims[0] * x_itemsize          # double-buffered input
    out_bytes = 2 * bt * pdims[-1] * 4                 # double-buffered output
    w_factor = 1 if single_buffer_weights else 2       # count params ONCE
    act_bytes = 4 * bt * max(pdims) * 4                # h + bf16 copy + dot + slack
    needed = in_bytes + out_bytes + w_factor * param_bytes + act_bytes

    default_scoped = 16 * 1024 * 1024
    if needed <= (default_scoped * 3) // 4:
        return None                                    # default limit is plenty

    try:
        vmem_cap = int(pltpu.get_tpu_info().vmem_capacity_bytes)
    except Exception:
        vmem_cap = 128 * 1024 * 1024
    # Leave headroom for Mosaic internal scratch (matters on v7x: 64 MiB/TC).
    return min(int(needed * 3 // 2), int(vmem_cap * 3 // 4))


# --------------------------------------------------------------------------- #
# pallas_call wrapper
# --------------------------------------------------------------------------- #
def _run_pallas(x_p, flat_params, *, bt, pdims, compute_dtype,
                single_buffer_weights, cost, vmem_limit):
    n_layers = len(flat_params) // 2
    padded_batch = x_p.shape[0]

    wb_kwargs = {}
    if single_buffer_weights:
        # Constant index_map -> no benefit from double buffering the weights.
        wb_kwargs = dict(pipeline_mode=pl.Buffered(1))

    in_specs = [pl.BlockSpec((bt, pdims[0]), lambda i: (i, 0))]
    for li in range(n_layers):
        pin, pout = pdims[li], pdims[li + 1]
        in_specs.append(pl.BlockSpec((pin, pout), lambda i: (0, 0), **wb_kwargs))
        in_specs.append(pl.BlockSpec((1, pout), lambda i: (0, 0), **wb_kwargs))
    out_spec = pl.BlockSpec((bt, pdims[-1]), lambda i: (i, 0))

    return pl.pallas_call(
        functools.partial(_fnn_kernel, compute_dtype=compute_dtype),
        out_shape=jax.ShapeDtypeStruct((padded_batch, pdims[-1]), jnp.float32),
        grid_spec=pltpu.PrefetchScalarGridSpec(
            num_scalar_prefetch=0,
            grid=(padded_batch // bt,),
            in_specs=in_specs,
            out_specs=out_spec,
        ),
        compiler_params=pltpu.CompilerParams(
            dimension_semantics=("parallel",),
            vmem_limit_bytes=vmem_limit,
        ),
        cost_estimate=cost,
    )(x_p, *flat_params)


def fnn_forward(x, prepared, *, batch_tile=_MAX_BATCH_TILE):
    """x: [batch, input_dim]; prepared: output of prepare_fnn_params.

    Returns f32 [batch, output_dim]. Matches y = tanh(...tanh(x@W0+b0)...)@WL+bL.
    """
    batch, in_dim = x.shape
    dims = prepared["dims"]
    pdims = prepared["pdims"]
    flat_params = prepared["flat_params"]
    compute_dtype = prepared["compute_dtype"]
    param_bytes = prepared["param_bytes"]
    n_layers = len(flat_params) // 2
    assert in_dim == dims[0], "input dim mismatch with prepared params"
    out_dim = dims[-1]

    bt, padded_batch = _choose_batch_tile(batch, max(pdims), batch_tile)

    # Feed x in the matmul compute dtype (bf16 by default: layer-0 already runs
    # the MXU in bf16 so numerics are unchanged); only pad the batch dim.
    x_p = jnp.asarray(x, compute_dtype)
    if padded_batch != batch:
        x_p = jnp.pad(x_p, ((0, padded_batch - batch), (0, 0)))

    # Cost estimate (helps XLA schedule around the custom call).
    flops = int(2 * padded_batch * sum(pdims[i] * pdims[i + 1]
                                       for i in range(n_layers)))
    transcendentals = int(padded_batch * sum(pdims[1:-1]))
    bytes_accessed = (int(x_p.size) * x_p.dtype.itemsize + param_bytes
                      + padded_batch * pdims[-1] * 4)
    cost = pl.CostEstimate(flops=flops, transcendentals=transcendentals,
                           bytes_accessed=bytes_accessed)

    vmem_limit = _vmem_limit_bytes(bt=bt, pdims=pdims,
                                   x_itemsize=x_p.dtype.itemsize,
                                   param_bytes=param_bytes,
                                   single_buffer_weights=True)
    try:
        out_p = _run_pallas(x_p, flat_params, bt=bt, pdims=pdims,
                            compute_dtype=compute_dtype,
                            single_buffer_weights=True,
                            cost=cost, vmem_limit=vmem_limit)
    except TypeError:
        # Only the pipeline_mode kwarg rejection (older JAX) falls back to the
        # default (double) buffering; genuine VMEM/lowering errors propagate.
        vmem_limit = _vmem_limit_bytes(bt=bt, pdims=pdims,
                                       x_itemsize=x_p.dtype.itemsize,
                                       param_bytes=param_bytes,
                                       single_buffer_weights=False)
        out_p = _run_pallas(x_p, flat_params, bt=bt, pdims=pdims,
                            compute_dtype=compute_dtype,
                            single_buffer_weights=False,
                            cost=cost, vmem_limit=vmem_limit)

    return out_p[:batch, :out_dim]


# --------------------------------------------------------------------------- #
# Reference / init helpers
# --------------------------------------------------------------------------- #
def init_fnn_params(key, input_dim, output_dim, hidden_layers):
    """Xavier-normal weights (gain=1), zero biases — mirrors FNN._initialize_weights."""
    dims = [input_dim] + list(hidden_layers) + [output_dim]
    params = []
    for i in range(len(dims) - 1):
        key, sub = jax.random.split(key)
        fan_in, fan_out = dims[i], dims[i + 1]
        std = jnp.sqrt(2.0 / (fan_in + fan_out))
        w = std * jax.random.normal(sub, (fan_in, fan_out), dtype=jnp.float32)
        b = jnp.zeros((1, fan_out), dtype=jnp.float32)
        params.append((w, b))
    return params


def fnn_reference_f32(x, params):
    """Plain-JAX f32 reference (module semantics)."""
    h = x
    for i, (w, b) in enumerate(params):
        h = h @ w + b
        if i < len(params) - 1:
            h = jnp.tanh(h)
    return h


def fnn_reference_matched(x, params):
    """Plain-JAX reference with the kernel's numerics (bf16 MXU feed, f32 acc)."""
    h = x.astype(jnp.float32)
    for i, (w, b) in enumerate(params):
        h = jnp.dot(h.astype(jnp.bfloat16), w.astype(jnp.bfloat16),
                    preferred_element_type=jnp.float32) + b
        if i < len(params) - 1:
            h = jnp.tanh(h)
    return h


if __name__ == "__main__":
    key = jax.random.PRNGKey(0)
    input_dim, output_dim = 4, 2
    hidden_layers = [32, 32, 32]
    batch = 16

    key, xkey = jax.random.split(key)
    x = jax.random.normal(xkey, (batch, input_dim), dtype=jnp.float32)

    params = init_fnn_params(key, input_dim, output_dim, hidden_layers)
    prepared = prepare_fnn_params(params)   # one-time padding + bf16 cast

    out = fnn_forward(x, prepared)
    out = jax.block_until_ready(out)
    assert out.shape == (batch, output_dim)

    # Tight check against a reference with identical numerics.
    ref_matched = fnn_reference_matched(x, params)
    assert jnp.allclose(out, ref_matched, atol=1e-4, rtol=1e-4), \
        "mismatch vs bf16-matched reference"

    # Looser sanity check against the pure-f32 module semantics.
    ref_f32 = fnn_reference_f32(x, params)
    assert jnp.allclose(out, ref_f32, atol=3e-2, rtol=3e-2), \
        "mismatch vs f32 reference"

    print("KERNEL_OK")
</pallas_src>

<mosaic_0001>
module attributes {stable_mosaic.version = 11 : i64} {
  func.func @_fnn_kernel(%arg0: i32, %arg1: memref<16x4xbf16, #tpu.memory_space<vmem>>, %arg2: memref<4x128xbf16, #tpu.memory_space<vmem>>, %arg3: memref<1x128xf32, #tpu.memory_space<vmem>>, %arg4: memref<128x128xbf16, #tpu.memory_space<vmem>>, %arg5: memref<1x128xf32, #tpu.memory_space<vmem>>, %arg6: memref<128x128xbf16, #tpu.memory_space<vmem>>, %arg7: memref<1x128xf32, #tpu.memory_space<vmem>>, %arg8: memref<128x128xbf16, #tpu.memory_space<vmem>>, %arg9: memref<1x128xf32, #tpu.memory_space<vmem>>, %arg10: memref<16x128xf32, #tpu.memory_space<vmem>>) attributes {dimension_semantics = [#tpu.dimension_semantics<parallel>], iteration_bounds = array<i64: 1>, scalar_prefetch = 0 : i64, scratch_operands = 0 : i64, tpu.core_type = #tpu.core_type<tc>, window_params = [{transform_indices = @transform_0, window_bounds = array<i64: 16, 4>}, {pipeline_mode = #tpu.pipeline_mode<synchronous>, transform_indices = @transform_1, window_bounds = array<i64: 4, 128>}, {pipeline_mode = #tpu.pipeline_mode<synchronous>, transform_indices = @transform_2, window_bounds = array<i64: 1, 128>}, {pipeline_mode = #tpu.pipeline_mode<synchronous>, transform_indices = @transform_3, window_bounds = array<i64: 128, 128>}, {pipeline_mode = #tpu.pipeline_mode<synchronous>, transform_indices = @transform_4, window_bounds = array<i64: 1, 128>}, {pipeline_mode = #tpu.pipeline_mode<synchronous>, transform_indices = @transform_5, window_bounds = array<i64: 128, 128>}, {pipeline_mode = #tpu.pipeline_mode<synchronous>, transform_indices = @transform_6, window_bounds = array<i64: 1, 128>}, {pipeline_mode = #tpu.pipeline_mode<synchronous>, transform_indices = @transform_7, window_bounds = array<i64: 128, 128>}, {pipeline_mode = #tpu.pipeline_mode<synchronous>, transform_indices = @transform_8, window_bounds = array<i64: 1, 128>}, {transform_indices = @transform_9, window_bounds = array<i64: 16, 128>}]} {
    %c0 = arith.constant 0 : index
    %c0_0 = arith.constant 0 : index
    %0 = vector.load %arg1[%c0, %c0_0] : memref<16x4xbf16, #tpu.memory_space<vmem>>, vector<16x4xbf16>
    %c0_1 = arith.constant 0 : index
    %c0_2 = arith.constant 0 : index
    %1 = vector.load %arg2[%c0_1, %c0_2] : memref<4x128xbf16, #tpu.memory_space<vmem>>, vector<4x128xbf16>
    %c0_3 = arith.constant 0 : index
    %c0_4 = arith.constant 0 : index
    %2 = vector.load %arg3[%c0_3, %c0_4] : memref<1x128xf32, #tpu.memory_space<vmem>>, vector<1x128xf32>
    %cst = arith.constant dense<0.000000e+00> : vector<16x128xf32>
    %3 = tpu.matmul %0, %1, %cst {dimension_numbers = #tpu.dot_dimension_numbers<[1], [0], [0], [1], [0, 0, 1, 1], [], []>} : vector<16x4xbf16>, vector<4x128xbf16>, vector<16x128xf32> -> vector<16x128xf32>
    %4 = vector.broadcast %2 : vector<1x128xf32> to vector<16x128xf32>
    %5 = arith.addf %3, %4 : vector<16x128xf32>
    %6 = math.tanh %5 : vector<16x128xf32>
    %c0_5 = arith.constant 0 : index
    %c0_6 = arith.constant 0 : index
    %7 = vector.load %arg4[%c0_5, %c0_6] : memref<128x128xbf16, #tpu.memory_space<vmem>>, vector<128x128xbf16>
    %c0_7 = arith.constant 0 : index
    %c0_8 = arith.constant 0 : index
    %8 = vector.load %arg5[%c0_7, %c0_8] : memref<1x128xf32, #tpu.memory_space<vmem>>, vector<1x128xf32>
    %9 = arith.truncf %6 : vector<16x128xf32> to vector<16x128xbf16>
    %cst_9 = arith.constant dense<0.000000e+00> : vector<16x128xf32>
    %10 = tpu.matmul %9, %7, %cst_9 {dimension_numbers = #tpu.dot_dimension_numbers<[1], [0], [0], [1], [0, 0, 1, 1], [], []>} : vector<16x128xbf16>, vector<128x128xbf16>, vector<16x128xf32> -> vector<16x128xf32>
    %11 = vector.broadcast %8 : vector<1x128xf32> to vector<16x128xf32>
    %12 = arith.addf %10, %11 : vector<16x128xf32>
    %13 = math.tanh %12 : vector<16x128xf32>
    %c0_10 = arith.constant 0 : index
    %c0_11 = arith.constant 0 : index
    %14 = vector.load %arg6[%c0_10, %c0_11] : memref<128x128xbf16, #tpu.memory_space<vmem>>, vector<128x128xbf16>
    %c0_12 = arith.constant 0 : index
    %c0_13 = arith.constant 0 : index
    %15 = vector.load %arg7[%c0_12, %c0_13] : memref<1x128xf32, #tpu.memory_space<vmem>>, vector<1x128xf32>
    %16 = arith.truncf %13 : vector<16x128xf32> to vector<16x128xbf16>
    %cst_14 = arith.constant dense<0.000000e+00> : vector<16x128xf32>
    %17 = tpu.matmul %16, %14, %cst_14 {dimension_numbers = #tpu.dot_dimension_numbers<[1], [0], [0], [1], [0, 0, 1, 1], [], []>} : vector<16x128xbf16>, vector<128x128xbf16>, vector<16x128xf32> -> vector<16x128xf32>
    %18 = vector.broadcast %15 : vector<1x128xf32> to vector<16x128xf32>
    %19 = arith.addf %17, %18 : vector<16x128xf32>
    %20 = math.tanh %19 : vector<16x128xf32>
    %c0_15 = arith.constant 0 : index
    %c0_16 = arith.constant 0 : index
    %21 = vector.load %arg8[%c0_15, %c0_16] : memref<128x128xbf16, #tpu.memory_space<vmem>>, vector<128x128xbf16>
    %c0_17 = arith.constant 0 : index
    %c0_18 = arith.constant 0 : index
    %22 = vector.load %arg9[%c0_17, %c0_18] : memref<1x128xf32, #tpu.memory_space<vmem>>, vector<1x128xf32>
    %23 = arith.truncf %20 : vector<16x128xf32> to vector<16x128xbf16>
    %cst_19 = arith.constant dense<0.000000e+00> : vector<16x128xf32>
    %24 = tpu.matmul %23, %21, %cst_19 {dimension_numbers = #tpu.dot_dimension_numbers<[1], [0], [0], [1], [0, 0, 1, 1], [], []>} : vector<16x128xbf16>, vector<128x128xbf16>, vector<16x128xf32> -> vector<16x128xf32>
    %25 = vector.broadcast %22 : vector<1x128xf32> to vector<16x128xf32>
    %26 = arith.addf %24, %25 : vector<16x128xf32>
    %c0_20 = arith.constant 0 : index
    %c0_21 = arith.constant 0 : index
    %27 = vector.load %arg10[%c0_20, %c0_21] : memref<16x128xf32, #tpu.memory_space<vmem>>, vector<16x128xf32>
    tpu.vector_store %arg10[%c0_20, %c0_21], %26 {strides = array<i32>} : memref<16x128xf32, #tpu.memory_space<vmem>>, vector<16x128xf32>,
    return
  }
  func.func @transform_0(%arg0: i32) -> (i32, i32) {
    %c0_i32 = arith.constant 0 : i32
    %c0_i32_0 = arith.constant 0 : i32
    return %arg0, %c0_i32 : i32, i32
  }
  func.func @transform_1(%arg0: i32) -> (i32, i32) {
    %c0_i32 = arith.constant 0 : i32
    %c0_i32_0 = arith.constant 0 : i32
    %c0_i32_1 = arith.constant 0 : i32
    return %c0_i32, %c0_i32_0 : i32, i32
  }
  func.func @transform_2(%arg0: i32) -> (i32, i32) {
    %c0_i32 = arith.constant 0 : i32
    %c0_i32_0 = arith.constant 0 : i32
    %c0_i32_1 = arith.constant 0 : i32
    return %c0_i32, %c0_i32_0 : i32, i32
  }
  func.func @transform_3(%arg0: i32) -> (i32, i32) {
    %c0_i32 = arith.constant 0 : i32
    %c0_i32_0 = arith.constant 0 : i32
    %c0_i32_1 = arith.constant 0 : i32
    return %c0_i32, %c0_i32_0 : i32, i32
  }
  func.func @transform_4(%arg0: i32) -> (i32, i32) {
    %c0_i32 = arith.constant 0 : i32
    %c0_i32_0 = arith.constant 0 : i32
    %c0_i32_1 = arith.constant 0 : i32
    return %c0_i32, %c0_i32_0 : i32, i32
  }
  func.func @transform_5(%arg0: i32) -> (i32, i32) {
    %c0_i32 = arith.constant 0 : i32
    %c0_i32_0 = arith.constant 0 : i32
    %c0_i32_1 = arith.constant 0 : i32
    return %c0_i32, %c0_i32_0 : i32, i32
  }
  func.func @transform_6(%arg0: i32) -> (i32, i32) {
    %c0_i32 = arith.constant 0 : i32
    %c0_i32_0 = arith.constant 0 : i32
    %c0_i32_1 = arith.constant 0 : i32
    return %c0_i32, %c0_i32_0 : i32, i32
  }
  func.func @transform_7(%arg0: i32) -> (i32, i32) {
    %c0_i32 = arith.constant 0 : i32
    %c0_i32_0 = arith.constant 0 : i32
    %c0_i32_1 = arith.constant 0 : i32
    return %c0_i32, %c0_i32_0 : i32, i32
  }
  func.func @transform_8(%arg0: i32) -> (i32, i32) {
    %c0_i32 = arith.constant 0 : i32
    %c0_i32_0 = arith.constant 0 : i32
    %c0_i32_1 = arith.constant 0 : i32
    return %c0_i32, %c0_i32_0 : i32, i32
  }
  func.func @transform_9(%arg0: i32) -> (i32, i32) {
    %c0_i32 = arith.constant 0 : i32
    %c0_i32_0 = arith.constant 0 : i32
    return %arg0, %c0_i32 : i32, i32
  }
}

</mosaic_0001>

<llo_original>
// kernel: tpu_custom_call.1
$region0: #{tpu_custom_call.1}
  #allocation0 [shape = 'u32[]', space=smem, size = 0x4, offset = 0x4, fixed_abs, tag = 'smem constant byte address 0x4 - core index']
  #allocation1 [shape = 'u32[144,128]{1,0:T(1,128)}', space=vmem, size = 0x12000, scoped, tag = 'internal scratch']
  %s0 = inlined_call_operand.vmem [shape: bf16[16,4], index: 0, kind: input, shape index: {}]
  %s1 = inlined_call_operand.vmem [shape: bf16[4,128], index: 1, kind: input, shape index: {}]
  %s2 = inlined_call_operand.vmem [shape: f32[1,128], index: 2, kind: input, shape index: {}]
  %s3 = inlined_call_operand.hbm [shape: bf16[128,128], index: 3, kind: input, shape index: {}]
  %s4 = inlined_call_operand.vmem [shape: f32[1,128], index: 4, kind: input, shape index: {}]
  %s5 = inlined_call_operand.hbm [shape: bf16[128,128], index: 5, kind: input, shape index: {}]
  %s6 = inlined_call_operand.vmem [shape: f32[1,128], index: 6, kind: input, shape index: {}]
  %s7 = inlined_call_operand.hbm [shape: bf16[128,128], index: 7, kind: input, shape index: {}]
  %s8 = inlined_call_operand.vmem [shape: f32[1,128], index: 8, kind: input, shape index: {}]
  %s9 = inlined_call_operand.hbm [shape: f32[16,128], index: 9, kind: output, shape index: {}]
  %s10 = sld [smem:[#allocation0]]
  $region58: #{tpu_custom_call.1} parent=0
    _
  %s12 = ssub.s32 1, %s10
  %s13 = scalar_select 0, %s12, %s10
  $region1: #{tpu_custom_call.1} parent=0
    #allocation2 [shape = 'u8[32768]{0}', space=vmem, size = 0x8000, scoped, tag = 'input window, operand 3, single buffered']
    #allocation3 [shape = 's32[1]{0}', space=sflag, size = 0x4, scoped, tag = 'scoped memory for tpu_custom_call.1']
    #allocation4 [shape = 's32[1]{0}', space=sflag, size = 0x4, scoped, tag = 'scoped memory for tpu_custom_call.1']
    #allocation5 [shape = 'u8[32768]{0}', space=vmem, size = 0x8000, scoped, tag = 'input window, operand 5, single buffered']
    #allocation6 [shape = 's32[1]{0}', space=sflag, size = 0x4, scoped, tag = 'scoped memory for tpu_custom_call.1']
    #allocation7 [shape = 'u8[32768]{0}', space=vmem, size = 0x8000, scoped, tag = 'input window, operand 7, single buffered']
    #allocation8 [shape = 'u8[8192]{0}', space=vmem, size = 0x2000, scoped, tag = 'output window, operand 0, single buffered']
    %14 = vsyncpa [#allocation3], 0
    %15 = vsyncpa [#allocation6], 0
    %16 = vsyncpa [#allocation4], 0
    // Predicated region
    $region2: #{tpu_custom_call.1} parent=1 // pred_check
      _
    $region3: #{tpu_custom_call.1} parent=1 // pred_check_branch
      %18 = sbr.rel (0) target = $region5
    $region4: #{tpu_custom_call.1} parent=1 // pred_region
      _
    $region5: #{tpu_custom_call.1} parent=1 // pred_fallthru
      _
    // Predicated region
    $region6: #{tpu_custom_call.1} parent=1 // pred_check
      _
    $region7: #{tpu_custom_call.1} parent=1 // pred_check_branch
      %20 = sbr.rel (0) target = $region9
    $region8: #{tpu_custom_call.1} parent=1 // pred_region
      _
    $region9: #{tpu_custom_call.1} parent=1 // pred_fallthru
      _
    // Predicated region
    $region10: #{tpu_custom_call.1} parent=1 // pred_check
      _
    $region11: #{tpu_custom_call.1} parent=1 // pred_check_branch
      %22 = sbr.rel (0) target = $region13
    $region12: #{tpu_custom_call.1} parent=1 // pred_region
      _
    $region13: #{tpu_custom_call.1} parent=1 // pred_fallthru
      _
    // Predicated region
    $region14: #{tpu_custom_call.1} parent=1 // pred_check
      _
    $region15: #{tpu_custom_call.1} parent=1 // pred_check_branch
      %24 = sbr.rel (0) target = $region17
    $region16: #{tpu_custom_call.1} parent=1 // pred_region
      %s26 = ssub.s32 1024, 1024
      %27 = vsyncadd [#allocation3], %s26
      %s28 = sshll.u32 [#allocation2], 4
      %s29 = int_to_ptr.vmem [resolvable:$true] %s28
      %34 = dma.hbm_to_vmem [thread:$0]  %s3, 1024, %s29, [#allocation3], 64, 64, 4
    $region17: #{tpu_custom_call.1} parent=1 // pred_fallthru
      _
    // Predicated region
    $region18: #{tpu_custom_call.1} parent=1 // pred_check
      _
    $region19: #{tpu_custom_call.1} parent=1 // pred_check_branch
      %36 = sbr.rel (0) target = $region21
    $region20: #{tpu_custom_call.1} parent=1 // pred_region
      _
    $region21: #{tpu_custom_call.1} parent=1 // pred_fallthru
      _
    // Predicated region
    $region22: #{tpu_custom_call.1} parent=1 // pred_check
      _
    $region23: #{tpu_custom_call.1} parent=1 // pred_check_branch
      %38 = sbr.rel (0) target = $region25
    $region24: #{tpu_custom_call.1} parent=1 // pred_region
      %s40 = ssub.s32 1024, 1024
      %41 = vsyncadd [#allocation6], %s40
      %s42 = sshll.u32 [#allocation5], 4
      %s43 = int_to_ptr.vmem [resolvable:$true] %s42
      %48 = dma.hbm_to_vmem [thread:$0]  %s5, 1024, %s43, [#allocation6], 64, 64, 4
    $region25: #{tpu_custom_call.1} parent=1 // pred_fallthru
      _
    // Predicated region
    $region26: #{tpu_custom_call.1} parent=1 // pred_check
      _
    $region27: #{tpu_custom_call.1} parent=1 // pred_check_branch
      %50 = sbr.rel (0) target = $region29
    $region28: #{tpu_custom_call.1} parent=1 // pred_region
      _
    $region29: #{tpu_custom_call.1} parent=1 // pred_fallthru
      _
    // Predicated region
    $region30: #{tpu_custom_call.1} parent=1 // pred_check
      _
    $region31: #{tpu_custom_call.1} parent=1 // pred_check_branch
      %52 = sbr.rel (0) target = $region33
    $region32: #{tpu_custom_call.1} parent=1 // pred_region
      %s54 = ssub.s32 1024, 1024
      %55 = vsyncadd [#allocation6], %s54
      %s56 = sshll.u32 [#allocation7], 4
      %s57 = int_to_ptr.vmem [resolvable:$true] %s56
      %62 = dma.hbm_to_vmem [thread:$0]  %s7, 1024, %s57, [#allocation6], 64, 64, 4
    $region33: #{tpu_custom_call.1} parent=1 // pred_fallthru
      _
    // Predicated region
    $region34: #{tpu_custom_call.1} parent=1 // pred_check
      _
    $region35: #{tpu_custom_call.1} parent=1 // pred_check_branch
      %64 = sbr.rel (0) target = $region37
    $region36: #{tpu_custom_call.1} parent=1 // pred_region
      _
    $region37: #{tpu_custom_call.1} parent=1 // pred_fallthru
      _
    // Predicated region
    $region38: #{tpu_custom_call.1} parent=1 // pred_check
      _
    $region39: #{tpu_custom_call.1} parent=1 // pred_check_branch
      %66 = sbr.rel (0) target = $region41
    $region40: #{tpu_custom_call.1} parent=1 // pred_region
      %67 = dma.done [#allocation3], 1024
    $region41: #{tpu_custom_call.1} parent=1 // pred_fallthru
      _
    // Predicated region
    $region42: #{tpu_custom_call.1} parent=1 // pred_check
      _
    $region43: #{tpu_custom_call.1} parent=1 // pred_check_branch
      %69 = sbr.rel (0) target = $region45
    $region44: #{tpu_custom_call.1} parent=1 // pred_region
      %70 = dma.done [#allocation6], 1024
    $region45: #{tpu_custom_call.1} parent=1 // pred_fallthru
      _
    // Predicated region
    $region46: #{tpu_custom_call.1} parent=1 // pred_check
      _
    $region47: #{tpu_custom_call.1} parent=1 // pred_check_branch
      %72 = sbr.rel (0) target = $region49
    $region48: #{tpu_custom_call.1} parent=1 // pred_region
      %73 = dma.done [#allocation6], 1024
    $region49: #{tpu_custom_call.1} parent=1 // pred_fallthru
      _
    %v75 = vld [vmem:[%s0] sm:$0xf]
    %v76 = vld [vmem:[%s0 + $0x4] sm:$0xf]
    %v77 = vld [vmem:[%s1] sm:$0x3]
    %v78 = vld [vmem:[%s2] sm:$0x1]
    %v80 = vlaneseq
    %v81 = vshrl.u32 %v80, 7
    %v82 = vsub.s32 0, %v81
    %v83 = vrot.slane %v78, %v82
    %v87 = vunpack.c.l.b16 %v75
    %v88 = vunpack.c.l.b16 %v76
    %v89 = vpack.c.b16 %v88, %v87
    %vm90 = vcmask 31744
    %v92 = vsel %vm90, %v89, 0
    %vm94 = vcmask 1041408
    %v96 = vsel %vm94, %v77, 0
    %98 = vmatprep.subr.bf16.mxu0 0
    %99 = vmatpush1.bf16.msra.mxu0 %v96
    %100 = vmatprep.subr.bf16.mxu0 0
    %101 = vmatpush1.bf16.msra.mxu0 0
    %102 = vmatprep.subr.bf16.mxu0 0
    %103 = vmatpush1.bf16.msra.mxu0 0
    %104 = vmatprep.subr.bf16.mxu0 0
    %105 = vmatpush1.bf16.msra.mxu0 0
    %106 = vmatprep.subr.bf16.mxu0 0
    %107 = vmatpush1.bf16.msra.mxu0 0
    %108 = vmatprep.subr.bf16.mxu0 0
    %109 = vmatpush1.bf16.msra.mxu0 0
    %110 = vmatprep.subr.bf16.mxu0 0
    %111 = vmatpush1.bf16.msra.mxu0 0
    %112 = vmatprep.subr.bf16.mxu0 0
    %113 = vmatpush1.bf16.msra.mxu0 0
    %114 = vmatprep.subr.bf16.mxu0 0
    %115 = vmatpush1.bf16.msra.mxu0 0
    %116 = vmatprep.subr.bf16.mxu0 0
    %117 = vmatpush1.bf16.msra.mxu0 0
    %118 = vmatprep.subr.bf16.mxu0 0
    %119 = vmatpush1.bf16.msra.mxu0 0
    %120 = vmatprep.subr.bf16.mxu0 0
    %121 = vmatpush1.bf16.msra.mxu0 0
    %122 = vmatprep.subr.bf16.mxu0 0
    %123 = vmatpush1.bf16.msra.mxu0 0
    %124 = vmatprep.subr.bf16.mxu0 0
    %125 = vmatpush1.bf16.msra.mxu0 0
    %126 = vmatprep.subr.bf16.mxu0 0
    %127 = vmatpush1.bf16.msra.mxu0 0
    %128 = vmatprep.subr.bf16.mxu0 0
    %129 = vmatpush1.bf16.msra.mxu0 0
    %130 = vmatprep.mubr.bf16.mxu0 0
    %131 = vmatmul.mubr.bf16.gmra.mrb[0].mxu0 %v92
    %v132 = vpop.f32.mrb[0].mxu0
    %v133 = vadd.f32 %v83, %v132
    %v134 = vpop.f32.mrb[0].mxu0
    %v135 = vpop.f32.mrb[0].mxu0
    %v136 = vadd.f32 %v83, %v135
    %v137 = vpop.f32.mrb[0].mxu0
    %138 = vdwg.mxu0
    %v139 = vtanh.pop %v133
    %v140 = vtanh.pop %v136
    %v141 = vld [vmem:[#allocation2] sm:$0xf]
    %v142 = vld [vmem:[#allocation2 + $0x4] sm:$0xf]
    %v143 = vld [vmem:[#allocation2 + $0x8] sm:$0xf]
    %v144 = vld [vmem:[#allocation2 + $0xc] sm:$0xf]
    %v145 = vld [vmem:[#allocation2 + $0x10] sm:$0xf]
    %v146 = vld [vmem:[#allocation2 + $0x14] sm:$0xf]
    %v147 = vld [vmem:[#allocation2 + $0x18] sm:$0xf]
    %v148 = vld [vmem:[#allocation2 + $0x1c] sm:$0xf]
    %v149 = vld [vmem:[#allocation2 + $0x20] sm:$0xf]
    %v150 = vld [vmem:[#allocation2 + $0x24] sm:$0xf]
    %v151 = vld [vmem:[#allocation2 + $0x28] sm:$0xf]
    %v152 = vld [vmem:[#allocation2 + $0x2c] sm:$0xf]
    %v153 = vld [vmem:[#allocation2 + $0x30] sm:$0xf]
    %v154 = vld [vmem:[#allocation2 + $0x34] sm:$0xf]
    %v155 = vld [vmem:[#allocation2 + $0x38] sm:$0xf]
    %v156 = vld [vmem:[#allocation2 + $0x3c] sm:$0xf]
    %v157 = vld [vmem:[%s4] sm:$0x1]
    %v158 = vpack.c.bf16 %v140, %v139
    %v160 = vlaneseq
    %v161 = vshrl.u32 %v160, 7
    %v162 = vsub.s32 0, %v161
    %v163 = vrot.slane %v157, %v162
    %v181 = vunpack.c.l.b16 %v141
    %v182 = vunpack.c.l.b16 %v142
    %v183 = vunpack.c.l.b16 %v143
    %v184 = vunpack.c.l.b16 %v144
    %v185 = vunpack.c.l.b16 %v145
    %v186 = vunpack.c.l.b16 %v146
    %v187 = vunpack.c.l.b16 %v147
    %v188 = vunpack.c.l.b16 %v148
    %v189 = vunpack.c.l.b16 %v149
    %v190 = vunpack.c.l.b16 %v150
    %v191 = vunpack.c.l.b16 %v151
    %v192 = vunpack.c.l.b16 %v152
    %v193 = vunpack.c.l.b16 %v153
    %v194 = vunpack.c.l.b16 %v154
    %v195 = vunpack.c.l.b16 %v155
    %v196 = vunpack.c.l.b16 %v156
    %v197 = vpack.c.b16 %v182, %v181
    %v198 = vpack.c.b16 %v184, %v183
    %v199 = vpack.c.b16 %v186, %v185
    %v200 = vpack.c.b16 %v188, %v187
    %v201 = vpack.c.b16 %v190, %v189
    %v202 = vpack.c.b16 %v192, %v191
    %v203 = vpack.c.b16 %v194, %v193
    %v204 = vpack.c.b16 %v196, %v195
    %213 = vmatprep.subr.bf16.mxu0 0
    %214 = vmatpush1.bf16.msra.mxu0 %v197
    %215 = vmatprep.subr.bf16.mxu0 0
    %216 = vmatpush1.bf16.msra.mxu0 %v198
    %217 = vmatprep.subr.bf16.mxu0 0
    %218 = vmatpush1.bf16.msra.mxu0 %v199
    %219 = vmatprep.subr.bf16.mxu0 0
    %220 = vmatpush1.bf16.msra.mxu0 %v200
    %221 = vmatprep.subr.bf16.mxu0 0
    %222 = vmatpush1.bf16.msra.mxu0 %v201
    %223 = vmatprep.subr.bf16.mxu0 0
    %224 = vmatpush1.bf16.msra.mxu0 %v202
    %225 = vmatprep.subr.bf16.mxu0 0
    %226 = vmatpush1.bf16.msra.mxu0 %v203
    %227 = vmatprep.subr.bf16.mxu0 0
    %228 = vmatpush1.bf16.msra.mxu0 %v204
    %229 = vmatprep.subr.bf16.mxu0 0
    %230 = vmatpush1.bf16.msra.mxu0 0
    %231 = vmatprep.subr.bf16.mxu0 0
    %232 = vmatpush1.bf16.msra.mxu0 0
    %233 = vmatprep.subr.bf16.mxu0 0
    %234 = vmatpush1.bf16.msra.mxu0 0
    %235 = vmatprep.subr.bf16.mxu0 0
    %236 = vmatpush1.bf16.msra.mxu0 0
    %237 = vmatprep.subr.bf16.mxu0 0
    %238 = vmatpush1.bf16.msra.mxu0 0
    %239 = vmatprep.subr.bf16.mxu0 0
    %240 = vmatpush1.bf16.msra.mxu0 0
    %241 = vmatprep.subr.bf16.mxu0 0
    %242 = vmatpush1.bf16.msra.mxu0 0
    %243 = vmatprep.subr.bf16.mxu0 0
    %244 = vmatpush1.bf16.msra.mxu0 0
    %245 = vmatprep.mubr.bf16.mxu0 0
    %246 = vmatmul.mubr.bf16.gmra.mrb[0].mxu0 %v158
    %v247 = vpop.f32.mrb[0].mxu0
    %v248 = vadd.f32 %v163, %v247
    %v249 = vpop.f32.mrb[0].mxu0
    %v250 = vpop.f32.mrb[0].mxu0
    %v251 = vadd.f32 %v163, %v250
    %v252 = vpop.f32.mrb[0].mxu0
    %253 = vdwg.mxu0
    %v254 = vtanh.pop %v248
    %v255 = vtanh.pop %v251
    %v256 = vld [vmem:[#allocation5] sm:$0xf]
    %v257 = vld [vmem:[#allocation5 + $0x4] sm:$0xf]
    %v258 = vld [vmem:[#allocation5 + $0x8] sm:$0xf]
    %v259 = vld [vmem:[#allocation5 + $0xc] sm:$0xf]
    %v260 = vld [vmem:[#allocation5 + $0x10] sm:$0xf]
    %v261 = vld [vmem:[#allocation5 + $0x14] sm:$0xf]
    %v262 = vld [vmem:[#allocation5 + $0x18] sm:$0xf]
    %v263 = vld [vmem:[#allocation5 + $0x1c] sm:$0xf]
    %v264 = vld [vmem:[#allocation5 + $0x20] sm:$0xf]
    %v265 = vld [vmem:[#allocation5 + $0x24] sm:$0xf]
    %v266 = vld [vmem:[#allocation5 + $0x28] sm:$0xf]
    %v267 = vld [vmem:[#allocation5 + $0x2c] sm:$0xf]
    %v268 = vld [vmem:[#allocation5 + $0x30] sm:$0xf]
    %v269 = vld [vmem:[#allocation5 + $0x34] sm:$0xf]
    %v270 = vld [vmem:[#allocation5 + $0x38] sm:$0xf]
    %v271 = vld [vmem:[#allocation5 + $0x3c] sm:$0xf]
    %v272 = vld [vmem:[%s6] sm:$0x1]
    %v273 = vpack.c.bf16 %v255, %v254
    %v275 = vlaneseq
    %v276 = vshrl.u32 %v275, 7
    %v277 = vsub.s32 0, %v276
    %v278 = vrot.slane %v272, %v277
    %v296 = vunpack.c.l.b16 %v256
    %v297 = vunpack.c.l.b16 %v257
    %v298 = vunpack.c.l.b16 %v258
    %v299 = vunpack.c.l.b16 %v259
    %v300 = vunpack.c.l.b16 %v260
    %v301 = vunpack.c.l.b16 %v261
    %v302 = vunpack.c.l.b16 %v262
    %v303 = vunpack.c.l.b16 %v263
    %v304 = vunpack.c.l.b16 %v264
    %v305 = vunpack.c.l.b16 %v265
    %v306 = vunpack.c.l.b16 %v266
    %v307 = vunpack.c.l.b16 %v267
    %v308 = vunpack.c.l.b16 %v268
    %v309 = vunpack.c.l.b16 %v269
    %v310 = vunpack.c.l.b16 %v270
    %v311 = vunpack.c.l.b16 %v271
    %v312 = vpack.c.b16 %v297, %v296
    %v313 = vpack.c.b16 %v299, %v298
    %v314 = vpack.c.b16 %v301, %v300
    %v315 = vpack.c.b16 %v303, %v302
    %v316 = vpack.c.b16 %v305, %v304
    %v317 = vpack.c.b16 %v307, %v306
    %v318 = vpack.c.b16 %v309, %v308
    %v319 = vpack.c.b16 %v311, %v310
    %328 = vmatprep.subr.bf16.mxu0 0
    %329 = vmatpush1.bf16.msra.mxu0 %v312
    %330 = vmatprep.subr.bf16.mxu0 0
    %331 = vmatpush1.bf16.msra.mxu0 %v313
    %332 = vmatprep.subr.bf16.mxu0 0
    %333 = vmatpush1.bf16.msra.mxu0 %v314
    %334 = vmatprep.subr.bf16.mxu0 0
    %335 = vmatpush1.bf16.msra.mxu0 %v315
    %336 = vmatprep.subr.bf16.mxu0 0
    %337 = vmatpush1.bf16.msra.mxu0 %v316
    %338 = vmatprep.subr.bf16.mxu0 0
    %339 = vmatpush1.bf16.msra.mxu0 %v317
    %340 = vmatprep.subr.bf16.mxu0 0
    %341 = vmatpush1.bf16.msra.mxu0 %v318
    %342 = vmatprep.subr.bf16.mxu0 0
    %343 = vmatpush1.bf16.msra.mxu0 %v319
    %344 = vmatprep.subr.bf16.mxu0 0
    %345 = vmatpush1.bf16.msra.mxu0 0
    %346 = vmatprep.subr.bf16.mxu0 0
    %347 = vmatpush1.bf16.msra.mxu0 0
    %348 = vmatprep.subr.bf16.mxu0 0
    %349 = vmatpush1.bf16.msra.mxu0 0
    %350 = vmatprep.subr.bf16.mxu0 0
    %351 = vmatpush1.bf16.msra.mxu0 0
    %352 = vmatprep.subr.bf16.mxu0 0
    %353 = vmatpush1.bf16.msra.mxu0 0
    %354 = vmatprep.subr.bf16.mxu0 0
    %355 = vmatpush1.bf16.msra.mxu0 0
    %356 = vmatprep.subr.bf16.mxu0 0
    %357 = vmatpush1.bf16.msra.mxu0 0
    %358 = vmatprep.subr.bf16.mxu0 0
    %359 = vmatpush1.bf16.msra.mxu0 0
    %360 = vmatprep.mubr.bf16.mxu0 0
    %361 = vmatmul.mubr.bf16.gmra.mrb[0].mxu0 %v273
    %v362 = vpop.f32.mrb[0].mxu0
    %v363 = vadd.f32 %v278, %v362
    %v364 = vpop.f32.mrb[0].mxu0
    %v365 = vpop.f32.mrb[0].mxu0
    %v366 = vadd.f32 %v278, %v365
    %v367 = vpop.f32.mrb[0].mxu0
    %368 = vdwg.mxu0
    %v369 = vtanh.pop %v363
    %v370 = vtanh.pop %v366
    %v371 = vld [vmem:[#allocation7] sm:$0xf]
    %v372 = vld [vmem:[#allocation7 + $0x4] sm:$0xf]
    %v373 = vld [vmem:[#allocation7 + $0x8] sm:$0xf]
    %v374 = vld [vmem:[#allocation7 + $0xc] sm:$0xf]
    %v375 = vld [vmem:[#allocation7 + $0x10] sm:$0xf]
    %v376 = vld [vmem:[#allocation7 + $0x14] sm:$0xf]
    %v377 = vld [vmem:[#allocation7 + $0x18] sm:$0xf]
    %v378 = vld [vmem:[#allocation7 + $0x1c] sm:$0xf]
    %v379 = vld [vmem:[#allocation7 + $0x20] sm:$0xf]
    %v380 = vld [vmem:[#allocation7 + $0x24] sm:$0xf]
    %v381 = vld [vmem:[#allocation7 + $0x28] sm:$0xf]
    %v382 = vld [vmem:[#allocation7 + $0x2c] sm:$0xf]
    %v383 = vld [vmem:[#allocation7 + $0x30] sm:$0xf]
    %v384 = vld [vmem:[#allocation7 + $0x34] sm:$0xf]
    %v385 = vld [vmem:[#allocation7 + $0x38] sm:$0xf]
    %v386 = vld [vmem:[#allocation7 + $0x3c] sm:$0xf]
    %v387 = vld [vmem:[%s8] sm:$0x1]
    %v388 = vpack.c.bf16 %v370, %v369
    %v390 = vlaneseq
    %v391 = vshrl.u32 %v390, 7
    %v392 = vsub.s32 0, %v391
    %v393 = vrot.slane %v387, %v392
    %v411 = vunpack.c.l.b16 %v371
    %v412 = vunpack.c.l.b16 %v372
    %v413 = vunpack.c.l.b16 %v373
    %v414 = vunpack.c.l.b16 %v374
    %v415 = vunpack.c.l.b16 %v375
    %v416 = vunpack.c.l.b16 %v376
    %v417 = vunpack.c.l.b16 %v377
    %v418 = vunpack.c.l.b16 %v378
    %v419 = vunpack.c.l.b16 %v379
    %v420 = vunpack.c.l.b16 %v380
    %v421 = vunpack.c.l.b16 %v381
    %v422 = vunpack.c.l.b16 %v382
    %v423 = vunpack.c.l.b16 %v383
    %v424 = vunpack.c.l.b16 %v384
    %v425 = vunpack.c.l.b16 %v385
    %v426 = vunpack.c.l.b16 %v386
    %v427 = vpack.c.b16 %v412, %v411
    %v428 = vpack.c.b16 %v414, %v413
    %v429 = vpack.c.b16 %v416, %v415
    %v430 = vpack.c.b16 %v418, %v417
    %v431 = vpack.c.b16 %v420, %v419
    %v432 = vpack.c.b16 %v422, %v421
    %v433 = vpack.c.b16 %v424, %v423
    %v434 = vpack.c.b16 %v426, %v425
    %443 = vmatprep.subr.bf16.mxu0 0
    %444 = vmatpush1.bf16.msra.mxu0 %v427
    %445 = vmatprep.subr.bf16.mxu0 0
    %446 = vmatpush1.bf16.msra.mxu0 %v428
    %447 = vmatprep.subr.bf16.mxu0 0
    %448 = vmatpush1.bf16.msra.mxu0 %v429
    %449 = vmatprep.subr.bf16.mxu0 0
    %450 = vmatpush1.bf16.msra.mxu0 %v430
    %451 = vmatprep.subr.bf16.mxu0 0
    %452 = vmatpush1.bf16.msra.mxu0 %v431
    %453 = vmatprep.subr.bf16.mxu0 0
    %454 = vmatpush1.bf16.msra.mxu0 %v432
    %455 = vmatprep.subr.bf16.mxu0 0
    %456 = vmatpush1.bf16.msra.mxu0 %v433
    %457 = vmatprep.subr.bf16.mxu0 0
    %458 = vmatpush1.bf16.msra.mxu0 %v434
    %459 = vmatprep.subr.bf16.mxu0 0
    %460 = vmatpush1.bf16.msra.mxu0 0
    %461 = vmatprep.subr.bf16.mxu0 0
    %462 = vmatpush1.bf16.msra.mxu0 0
    %463 = vmatprep.subr.bf16.mxu0 0
    %464 = vmatpush1.bf16.msra.mxu0 0
    %465 = vmatprep.subr.bf16.mxu0 0
    %466 = vmatpush1.bf16.msra.mxu0 0
    %467 = vmatprep.subr.bf16.mxu0 0
    %468 = vmatpush1.bf16.msra.mxu0 0
    %469 = vmatprep.subr.bf16.mxu0 0
    %470 = vmatpush1.bf16.msra.mxu0 0
    %471 = vmatprep.subr.bf16.mxu0 0
    %472 = vmatpush1.bf16.msra.mxu0 0
    %473 = vmatprep.subr.bf16.mxu0 0
    %474 = vmatpush1.bf16.msra.mxu0 0
    %475 = vmatprep.mubr.bf16.mxu0 0
    %476 = vmatmul.mubr.bf16.gmra.mrb[0].mxu0 %v388
    %v477 = vpop.f32.mrb[0].mxu0
    %v478 = vadd.f32 %v393, %v477
    %v479 = vpop.f32.mrb[0].mxu0
    %v480 = vpop.f32.mrb[0].mxu0
    %v481 = vadd.f32 %v393, %v480
    %v482 = vpop.f32.mrb[0].mxu0
    %483 = vdwg.mxu0
    %484 = vst [vmem:[#allocation8] sm:$0xff] %v478
    %485 = vst [vmem:[#allocation8 + $0x8] sm:$0xff] %v481
    // Predicated region
    $region50: #{tpu_custom_call.1} parent=1 // pred_check
      _
    $region51: #{tpu_custom_call.1} parent=1 // pred_check_branch
      %487 = sbr.rel (0) target = $region53
    $region52: #{tpu_custom_call.1} parent=1 // pred_region
      %s489 = ssub.s32 256, 256
      %490 = vsyncadd [#allocation4], %s489
      %s491 = sshll.u32 [#allocation8], 4
      %s492 = int_to_ptr.vmem [resolvable:$true] %s491
      %497 = dma.vmem_to_hbm [thread:$0]  %s492, 256, %s9, [#allocation4], 128, 128, 8
    $region53: #{tpu_custom_call.1} parent=1 // pred_fallthru
      _
    // Predicated region
    $region54: #{tpu_custom_call.1} parent=1 // pred_check
      _
    $region55: #{tpu_custom_call.1} parent=1 // pred_check_branch
      %499 = sbr.rel (0) target = $region57
    $region56: #{tpu_custom_call.1} parent=1 // pred_region
      %500 = dma.done [#allocation4], 256
    $region57: #{tpu_custom_call.1} parent=1 // pred_fallthru
      _
    %501 = vsyncpa [#allocation3], 1
    %502 = vsyncpa [#allocation6], 1
    %503 = vsyncpa [#allocation4], 1

</llo_original>
